<compile_context>
chip_gen: v5e
topology: v5e:2x2
jax: 0.10.0
libtpu: 0.0.40
codegen_flags: <defaults>
</compile_context>

<pallas_src>
import functools

import jax
import jax.numpy as jnp
from jax import lax
from jax.experimental import pallas as pl
from jax.experimental.pallas import tpu as pltpu

_BN_EPS = 1e-5


def _fold_bn(conv_bias, gamma, beta, mean, var):
    scale = gamma / jnp.sqrt(var + _BN_EPS)
    shift = (conv_bias - mean) * scale + beta
    return scale, shift


# ---------------------------------------------------------------------------
# Kernel 1: ConvTranspose2d(kernel=2, stride=2), bias fused.
#   out[n, 2i+ki, 2j+kj, co] = sum_ci x1[n,i,j,ci] * W[ci,co,ki,kj] + b[co]
# Output block (1, H1, 2, W1, 2*CO): element [0,i,ki,j,kj*CO+co] is exactly the
# value of the upsampled pixel (2i+ki, 2j+kj, co), so the wrapper reshape to
# (N, 2H1, 2W1, CO) is a pure row-major reinterpretation (bitcast, no HBM pass).
# ---------------------------------------------------------------------------
def _convT_kernel(x1_ref, wup_ref, bup_ref, o_ref):
    H1 = o_ref.shape[1]
    W1 = o_ref.shape[3]
    F = o_ref.shape[4]                               # 2 * CO
    x1 = x1_ref[0]                                   # (H1*W1, C1) bf16
    for ki in range(2):
        y = jnp.dot(x1, wup_ref[ki], preferred_element_type=jnp.float32)
        y = y + bup_ref[0]                           # (H1*W1, 2*CO) f32
        o_ref[0, :, ki, :, :] = y.reshape(H1, W1, F).astype(o_ref.dtype)


def conv_transpose2x2_s2(x1_nhwc_bf16, up_w, up_b):
    """x1: (N,H1,W1,C1) bf16; up_w: (C1,CO,2,2) f32 (PyTorch layout); up_b: (CO,)."""
    N, H1, W1, C1 = x1_nhwc_bf16.shape
    CO = up_w.shape[1]
    # (C1, CO, ki, kj) -> (ki, C1, kj*CO+co)
    wup = jnp.transpose(up_w, (2, 0, 3, 1)).reshape(2, C1, 2 * CO).astype(jnp.bfloat16)
    bup = jnp.tile(up_b, 2).reshape(1, 2 * CO).astype(jnp.float32)
    x1f = x1_nhwc_bf16.reshape(N, H1 * W1, C1)       # 2D matmul-shaped slab per image

    out = pl.pallas_call(
        _convT_kernel,
        out_shape=jax.ShapeDtypeStruct((N, H1, 2, W1, 2 * CO), jnp.bfloat16),
        grid=(N,),
        in_specs=[
            pl.BlockSpec((1, H1 * W1, C1), lambda n: (n, 0, 0)),
            pl.BlockSpec((2, C1, 2 * CO), lambda n: (0, 0, 0)),
            pl.BlockSpec((1, 2 * CO), lambda n: (0, 0)),
        ],
        out_specs=pl.BlockSpec((1, H1, 2, W1, 2 * CO), lambda n: (n, 0, 0, 0, 0)),
        compiler_params=pltpu.CompilerParams(
            dimension_semantics=("parallel",),
            vmem_limit_bytes=32 * 1024 * 1024,
        ),
    )(x1f, wup, bup)
    # Free (bitcast) reshape: identical row-major layout.
    return out.reshape(N, 2 * H1, 2 * W1, CO)


# ---------------------------------------------------------------------------
# Kernel 2: fused  pad (asym + halo)  +  concat (as split-K)  +
#           conv3x3+BN+ReLU  +  conv3x3+BN+ReLU.
# BN scale is pre-folded into the bf16 weights; only the shift is added here.
# The conv1 intermediate never leaves VMEM.
# ---------------------------------------------------------------------------
def _conv_block_kernel(x2_ref, u_ref, w1a_ref, w1b_ref, t1_ref, w2_ref, t2_ref,
                       o_ref, xp2_s, up_s, h1_s, *, pad_top, pad_left):
    H2, W2, C2 = x2_ref.shape[1], x2_ref.shape[2], x2_ref.shape[3]
    Hu, Wu, CO = u_ref.shape[1], u_ref.shape[2], u_ref.shape[3]
    HW = H2 * W2

    # Zero-padded VMEM halo buffers (decoder F.pad + conv pad=1, no HBM pad pass).
    xp2_s[...] = jnp.zeros_like(xp2_s)
    xp2_s[1:1 + H2, 1:1 + W2, :] = x2_ref[0].astype(xp2_s.dtype)
    up_s[...] = jnp.zeros_like(up_s)
    up_s[1 + pad_top:1 + pad_top + Hu,
         1 + pad_left:1 + pad_left + Wu, :] = u_ref[0].astype(up_s.dtype)

    # conv1: channel concat [x2 | upsample] realised as split-K accumulation.
    acc = jnp.zeros((HW, CO), jnp.float32)
    for dy in range(3):
        for dx in range(3):
            xa = xp2_s[dy:dy + H2, dx:dx + W2, :].reshape(HW, C2).astype(jnp.bfloat16)
            acc = acc + jnp.dot(xa, w1a_ref[dy, dx],
                                preferred_element_type=jnp.float32)
            xb = up_s[dy:dy + H2, dx:dx + W2, :].reshape(HW, CO).astype(jnp.bfloat16)
            acc = acc + jnp.dot(xb, w1b_ref[dy, dx],
                                preferred_element_type=jnp.float32)
    h1 = jnp.maximum(acc + t1_ref[0], 0.0)            # BN shift + ReLU (scale in weights)

    h1_s[...] = jnp.zeros_like(h1_s)
    h1_s[1:1 + H2, 1:1 + W2, :] = h1.reshape(H2, W2, CO).astype(h1_s.dtype)

    # conv2 on the VMEM-resident intermediate.
    acc2 = jnp.zeros((HW, CO), jnp.float32)
    for dy in range(3):
        for dx in range(3):
            xc = h1_s[dy:dy + H2, dx:dx + W2, :].reshape(HW, CO).astype(jnp.bfloat16)
            acc2 = acc2 + jnp.dot(xc, w2_ref[dy, dx],
                                  preferred_element_type=jnp.float32)
    y = jnp.maximum(acc2 + t2_ref[0], 0.0)
    o_ref[0] = y.astype(o_ref.dtype)


def conv_block(x2, u, w1_scaled, t1, w2_scaled, t2, *, pad_top, pad_left):
    """x2: (N,H2,W2,C2) bf16; u: (N,Hu,Wu,CO) bf16; w*_scaled: HWIO f32 (BN scale folded)."""
    N, H2, W2, C2 = x2.shape
    _, Hu, Wu, CO = u.shape
    w1a = w1_scaled[:, :, :C2, :].astype(jnp.bfloat16)     # K-block for x2 channels
    w1b = w1_scaled[:, :, C2:, :].astype(jnp.bfloat16)     # K-block for upsample channels
    w2b = w2_scaled.astype(jnp.bfloat16)
    kernel = functools.partial(_conv_block_kernel, pad_top=pad_top, pad_left=pad_left)

    out = pl.pallas_call(
        kernel,
        out_shape=jax.ShapeDtypeStruct((N, H2 * W2, CO), jnp.float32),
        grid=(N,),
        in_specs=[
            pl.BlockSpec((1, H2, W2, C2), lambda n: (n, 0, 0, 0)),
            pl.BlockSpec((1, Hu, Wu, CO), lambda n: (n, 0, 0, 0)),
            pl.BlockSpec((3, 3, C2, CO), lambda n: (0, 0, 0, 0)),
            pl.BlockSpec((3, 3, CO, CO), lambda n: (0, 0, 0, 0)),
            pl.BlockSpec((1, CO), lambda n: (0, 0)),
            pl.BlockSpec((3, 3, CO, CO), lambda n: (0, 0, 0, 0)),
            pl.BlockSpec((1, CO), lambda n: (0, 0)),
        ],
        out_specs=pl.BlockSpec((1, H2 * W2, CO), lambda n: (n, 0, 0)),
        scratch_shapes=[
            pltpu.VMEM((H2 + 2, W2 + 2, C2), jnp.float32),   # padded x2
            pltpu.VMEM((H2 + 2, W2 + 2, CO), jnp.float32),   # padded upsample
            pltpu.VMEM((H2 + 2, W2 + 2, CO), jnp.float32),   # padded conv1 output
        ],
        compiler_params=pltpu.CompilerParams(
            dimension_semantics=("parallel",),
            vmem_limit_bytes=32 * 1024 * 1024,
        ),
    )(x2, u, w1a, w1b, t1, w2b, t2)
    return out.reshape(N, H2, W2, CO)


# ---------------------------------------------------------------------------
# DecoderConv forward (NCHW in / NCHW out, matching the PyTorch module).
# ---------------------------------------------------------------------------
def decoder_conv_forward(p, x1_nchw, x2_nchw):
    # NCHW -> NHWC; bf16 feeds the MXU and halves activation HBM traffic.
    x1 = jnp.transpose(x1_nchw, (0, 2, 3, 1)).astype(jnp.bfloat16)
    x2 = jnp.transpose(x2_nchw, (0, 2, 3, 1)).astype(jnp.bfloat16)
    _, H2, W2, _ = x2.shape
    CO = p["up_w"].shape[1]

    # 1) upsample
    u = conv_transpose2x2_s2(x1, p["up_w"], p["up_b"])   # (N, 2H1, 2W1, CO) bf16
    Hu, Wu = u.shape[1], u.shape[2]

    # 2) F.pad(x1, (diffX, 0, diffY, 0)) quirk: diffX (H difference) pads W-left,
    #    diffY (W difference) pads H-top.  torch.cat only succeeds when
    #    H2 - Hu == W2 - Wu, so the quirk is reproduced exactly.
    diffX = H2 - Hu
    diffY = W2 - Wu
    pad_top, pad_left = diffY, diffX
    assert pad_top >= 0 and pad_left >= 0
    assert pad_top + Hu == H2 and pad_left + Wu == W2, (
        "reference module requires H2 - 2*H1 == W2 - 2*W1")

    # 3)+4)+5) pad + concat + conv1(+BN+ReLU) + conv2(+BN+ReLU), fused in one kernel.
    s1, t1 = _fold_bn(p["c1_b"], p["bn1_g"], p["bn1_b"], p["bn1_m"], p["bn1_v"])
    s2, t2 = _fold_bn(p["c2_b"], p["bn2_g"], p["bn2_b"], p["bn2_m"], p["bn2_v"])
    w1s = p["c1_w_hwio"] * s1            # eval-mode BN scale folded into conv weights
    w2s = p["c2_w_hwio"] * s2
    y = conv_block(x2, u, w1s, t1.reshape(1, CO), w2s, t2.reshape(1, CO),
                   pad_top=pad_top, pad_left=pad_left)
    return jnp.transpose(y, (0, 3, 1, 2))                # NHWC -> NCHW, f32


# ---------------------------------------------------------------------------
# Pure-JAX reference with matched bf16 cast points (verification only).
# ---------------------------------------------------------------------------
def decoder_conv_reference(p, x1_nchw, x2_nchw):
    x1 = jnp.transpose(x1_nchw, (0, 2, 3, 1)).astype(jnp.bfloat16)
    x2 = jnp.transpose(x2_nchw, (0, 2, 3, 1)).astype(jnp.bfloat16)
    N, H1, W1, _ = x1.shape
    CO = p["up_w"].shape[1]
    t = jnp.einsum("nhwi,iokl->nhkwlo", x1, p["up_w"].astype(jnp.bfloat16),
                   preferred_element_type=jnp.float32)
    u = t.reshape(N, 2 * H1, 2 * W1, CO) + p["up_b"]
    diffX = x2.shape[1] - u.shape[1]
    diffY = x2.shape[2] - u.shape[2]
    u = jnp.pad(u, ((0, 0), (diffY, 0), (diffX, 0), (0, 0))).astype(jnp.bfloat16)

    def conv_bn_relu(x, w_hwio, scale, shift):
        wq = (w_hwio * scale).astype(jnp.bfloat16)
        y = lax.conv_general_dilated(
            x, wq, window_strides=(1, 1), padding=((1, 1), (1, 1)),
            dimension_numbers=("NHWC", "HWIO", "NHWC"),
            preferred_element_type=jnp.float32)
        return jnp.maximum(y + shift, 0.0)

    s1, t1 = _fold_bn(p["c1_b"], p["bn1_g"], p["bn1_b"], p["bn1_m"], p["bn1_v"])
    s2, t2 = _fold_bn(p["c2_b"], p["bn2_g"], p["bn2_b"], p["bn2_m"], p["bn2_v"])
    x = jnp.concatenate([x2, u], axis=-1)
    x = conv_bn_relu(x, p["c1_w_hwio"], s1, t1).astype(jnp.bfloat16)
    x = conv_bn_relu(x, p["c2_w_hwio"], s2, t2)
    return jnp.transpose(x, (0, 3, 1, 2))


# ---------------------------------------------------------------------------
# Deterministic parameter init (shapes per the PyTorch __init__).
# ---------------------------------------------------------------------------
def init_params(key, ci, co):
    ks = jax.random.split(key, 10)
    p = {}
    p["up_w"] = 0.1 * jax.random.normal(ks[0], (ci, co, 2, 2), jnp.float32)
    p["up_b"] = 0.1 * jax.random.normal(ks[1], (co,), jnp.float32)
    c1_w = 0.1 * jax.random.normal(ks[2], (co, ci, 3, 3), jnp.float32)   # OIHW
    p["c1_w_hwio"] = jnp.transpose(c1_w, (2, 3, 1, 0))
    p["c1_b"] = 0.1 * jax.random.normal(ks[3], (co,), jnp.float32)
    p["bn1_g"] = 1.0 + 0.1 * jax.random.normal(ks[4], (co,), jnp.float32)
    p["bn1_b"] = 0.1 * jax.random.normal(ks[5], (co,), jnp.float32)
    p["bn1_m"] = 0.1 * jax.random.normal(ks[6], (co,), jnp.float32)
    p["bn1_v"] = 1.0 + 0.1 * jnp.abs(jax.random.normal(ks[7], (co,), jnp.float32))
    c2_w = 0.1 * jax.random.normal(ks[8], (co, co, 3, 3), jnp.float32)
    p["c2_w_hwio"] = jnp.transpose(c2_w, (2, 3, 1, 0))
    p["c2_b"] = 0.1 * jax.random.normal(ks[9], (co,), jnp.float32)
    p["bn2_g"] = jnp.linspace(0.9, 1.1, co).astype(jnp.float32)
    p["bn2_b"] = jnp.linspace(-0.05, 0.05, co).astype(jnp.float32)
    p["bn2_m"] = jnp.linspace(-0.1, 0.1, co).astype(jnp.float32)
    p["bn2_v"] = jnp.linspace(0.9, 1.2, co).astype(jnp.float32)
    return p


if __name__ == "__main__":
    key = jax.random.PRNGKey(0)
    kp, k1, k2, k3, k4 = jax.random.split(key, 5)
    ci, co = 8, 4
    params = init_params(kp, ci, co)

    # Case A: square, zero decoder padding (diff == 0).
    x1a = jax.random.normal(k1, (2, ci, 8, 8), jnp.float32)            # NCHW
    x2a = jax.random.normal(k2, (2, ci - co, 16, 16), jnp.float32)     # NCHW
    # Case B: rectangular, non-zero asymmetric padding (diff == 2) -> exercises F.pad path.
    x1b = jax.random.normal(k3, (1, ci, 7, 5), jnp.float32)
    x2b = jax.random.normal(k4, (1, ci - co, 16, 12), jnp.float32)

    for x1, x2 in [(x1a, x2a), (x1b, x2b)]:
        out = jax.block_until_ready(decoder_conv_forward(params, x1, x2))
        expect = (x1.shape[0], co, x2.shape[2], x2.shape[3])
        assert out.shape == expect, (out.shape, expect)
        ref = decoder_conv_reference(params, x1, x2)
        # Tolerance is bounded by the intentional bf16 MXU inputs (f32 accumulation).
        max_err = float(jnp.max(jnp.abs(out - ref)))
        assert jnp.allclose(out, ref, atol=2e-3, rtol=2e-3), max_err

    print("KERNEL_OK")
</pallas_src>

<mosaic_0001>
module attributes {stable_mosaic.version = 11 : i64} {
  func.func @_convT_kernel(%arg0: i32, %arg1: memref<1x64x8xbf16, #tpu.memory_space<vmem>>, %arg2: memref<2x8x8xbf16, #tpu.memory_space<vmem>>, %arg3: memref<1x8xf32, #tpu.memory_space<vmem>>, %arg4: memref<1x8x2x8x8xbf16, #tpu.memory_space<vmem>>) attributes {dimension_semantics = [#tpu.dimension_semantics<parallel>], iteration_bounds = array<i64: 2>, scalar_prefetch = 0 : i64, scratch_operands = 0 : i64, tpu.core_type = #tpu.core_type<tc>, window_params = [{transform_indices = @transform_0, window_bounds = array<i64: 1, 64, 8>}, {pipeline_mode = #tpu.pipeline_mode<synchronous>, transform_indices = @transform_1, window_bounds = array<i64: 2, 8, 8>}, {pipeline_mode = #tpu.pipeline_mode<synchronous>, transform_indices = @transform_2, window_bounds = array<i64: 1, 8>}, {transform_indices = @transform_3, window_bounds = array<i64: 1, 8, 2, 8, 8>}]} {
    %c0 = arith.constant 0 : index
    %c0_0 = arith.constant 0 : index
    %c0_1 = arith.constant 0 : index
    %0 = vector.load %arg1[%c0, %c0_0, %c0_1] : memref<1x64x8xbf16, #tpu.memory_space<vmem>>, vector<1x64x8xbf16>
    %1 = vector.shape_cast %0 : vector<1x64x8xbf16> to vector<64x8xbf16>
    %c0_2 = arith.constant 0 : index
    %c0_3 = arith.constant 0 : index
    %c0_4 = arith.constant 0 : index
    %2 = vector.load %arg2[%c0_2, %c0_3, %c0_4] : memref<2x8x8xbf16, #tpu.memory_space<vmem>>, vector<1x8x8xbf16>
    %3 = vector.shape_cast %2 : vector<1x8x8xbf16> to vector<8x8xbf16>
    %cst = arith.constant dense<0.000000e+00> : vector<64x8xf32>
    %4 = tpu.matmul %1, %3, %cst {dimension_numbers = #tpu.dot_dimension_numbers<[1], [0], [0], [1], [0, 0, 1, 1], [], []>} : vector<64x8xbf16>, vector<8x8xbf16>, vector<64x8xf32> -> vector<64x8xf32>
    %c0_5 = arith.constant 0 : index
    %c0_6 = arith.constant 0 : index
    %5 = vector.load %arg3[%c0_5, %c0_6] : memref<1x8xf32, #tpu.memory_space<vmem>>, vector<1x8xf32>
    %6 = vector.shape_cast %5 : vector<1x8xf32> to vector<8xf32>
    %7 = vector.shape_cast %6 : vector<8xf32> to vector<1x8xf32>
    %8 = vector.broadcast %7 : vector<1x8xf32> to vector<64x8xf32>
    %9 = arith.addf %4, %8 : vector<64x8xf32>
    %10 = vector.shape_cast %9 : vector<64x8xf32> to vector<8x8x8xf32>
    %11 = arith.truncf %10 : vector<8x8x8xf32> to vector<8x8x8xbf16>
    %c0_7 = arith.constant 0 : index
    %c0_8 = arith.constant 0 : index
    %c0_9 = arith.constant 0 : index
    %c0_10 = arith.constant 0 : index
    %c0_11 = arith.constant 0 : index
    %12 = vector.load %arg4[%c0_7, %c0_8, %c0_9, %c0_10, %c0_11] : memref<1x8x2x8x8xbf16, #tpu.memory_space<vmem>>, vector<1x8x1x8x8xbf16>
    %13 = vector.shape_cast %12 : vector<1x8x1x8x8xbf16> to vector<8x8x8xbf16>
    %14 = vector.shape_cast %11 : vector<8x8x8xbf16> to vector<1x8x1x8x8xbf16>
    tpu.vector_store %arg4[%c0_7, %c0_8, %c0_9, %c0_10, %c0_11], %14 {strides = array<i32>} : memref<1x8x2x8x8xbf16, #tpu.memory_space<vmem>>, vector<1x8x1x8x8xbf16>,
    %c1 = arith.constant 1 : index
    %c0_12 = arith.constant 0 : index
    %c0_13 = arith.constant 0 : index
    %15 = vector.load %arg2[%c1, %c0_12, %c0_13] : memref<2x8x8xbf16, #tpu.memory_space<vmem>>, vector<1x8x8xbf16>
    %16 = vector.shape_cast %15 : vector<1x8x8xbf16> to vector<8x8xbf16>
    %cst_14 = arith.constant dense<0.000000e+00> : vector<64x8xf32>
    %17 = tpu.matmul %1, %16, %cst_14 {dimension_numbers = #tpu.dot_dimension_numbers<[1], [0], [0], [1], [0, 0, 1, 1], [], []>} : vector<64x8xbf16>, vector<8x8xbf16>, vector<64x8xf32> -> vector<64x8xf32>
    %c0_15 = arith.constant 0 : index
    %c0_16 = arith.constant 0 : index
    %18 = vector.load %arg3[%c0_15, %c0_16] : memref<1x8xf32, #tpu.memory_space<vmem>>, vector<1x8xf32>
    %19 = vector.shape_cast %18 : vector<1x8xf32> to vector<8xf32>
    %20 = vector.shape_cast %19 : vector<8xf32> to vector<1x8xf32>
    %21 = vector.broadcast %20 : vector<1x8xf32> to vector<64x8xf32>
    %22 = arith.addf %17, %21 : vector<64x8xf32>
    %23 = vector.shape_cast %22 : vector<64x8xf32> to vector<8x8x8xf32>
    %24 = arith.truncf %23 : vector<8x8x8xf32> to vector<8x8x8xbf16>
    %c0_17 = arith.constant 0 : index
    %c0_18 = arith.constant 0 : index
    %c1_19 = arith.constant 1 : index
    %c0_20 = arith.constant 0 : index
    %c0_21 = arith.constant 0 : index
    %25 = vector.load %arg4[%c0_17, %c0_18, %c1_19, %c0_20, %c0_21] : memref<1x8x2x8x8xbf16, #tpu.memory_space<vmem>>, vector<1x8x1x8x8xbf16>
    %26 = vector.shape_cast %25 : vector<1x8x1x8x8xbf16> to vector<8x8x8xbf16>
    %27 = vector.shape_cast %24 : vector<8x8x8xbf16> to vector<1x8x1x8x8xbf16>
    tpu.vector_store %arg4[%c0_17, %c0_18, %c1_19, %c0_20, %c0_21], %27 {strides = array<i32>} : memref<1x8x2x8x8xbf16, #tpu.memory_space<vmem>>, vector<1x8x1x8x8xbf16>,
    return
  }
  func.func @transform_0(%arg0: i32) -> (i32, i32, i32) {
    %c0_i32 = arith.constant 0 : i32
    %c0_i32_0 = arith.constant 0 : i32
    %c0_i32_1 = arith.constant 0 : i32
    return %arg0, %c0_i32, %c0_i32_0 : i32, i32, i32
  }
  func.func @transform_1(%arg0: i32) -> (i32, i32, i32) {
    %c0_i32 = arith.constant 0 : i32
    %c0_i32_0 = arith.constant 0 : i32
    %c0_i32_1 = arith.constant 0 : i32
    %c0_i32_2 = arith.constant 0 : i32
    return %c0_i32, %c0_i32_0, %c0_i32_1 : i32, i32, i32
  }
  func.func @transform_2(%arg0: i32) -> (i32, i32) {
    %c0_i32 = arith.constant 0 : i32
    %c0_i32_0 = arith.constant 0 : i32
    %c0_i32_1 = arith.constant 0 : i32
    return %c0_i32, %c0_i32_0 : i32, i32
  }
  func.func @transform_3(%arg0: i32) -> (i32, i32, i32, i32, i32) {
    %c0_i32 = arith.constant 0 : i32
    %c0_i32_0 = arith.constant 0 : i32
    %c0_i32_1 = arith.constant 0 : i32
    %c0_i32_2 = arith.constant 0 : i32
    %c0_i32_3 = arith.constant 0 : i32
    return %arg0, %c0_i32, %c0_i32_0, %c0_i32_1, %c0_i32_2 : i32, i32, i32, i32, i32
  }
}

</mosaic_0001>

<llo_original>
// kernel: tpu_custom_call.1
$region0: #{tpu_custom_call.1}
  #allocation0 [shape = 'u32[]', space=smem, size = 0x4, offset = 0x4, fixed_abs, tag = 'smem constant byte address 0x4 - core index']
  #allocation1 [shape = 'u32[72,128]{1,0:T(1,128)}', space=vmem, size = 0x9000, scoped, tag = 'internal scratch']
  %s0 = inlined_call_operand.vmem [shape: bf16[2,64,8], index: 0, kind: input, shape index: {}]
  %s1 = inlined_call_operand.vmem [shape: bf16[2,8,8], index: 1, kind: input, shape index: {}]
  %s2 = inlined_call_operand.vmem [shape: f32[1,8], index: 2, kind: input, shape index: {}]
  %s3 = inlined_call_operand.hbm [shape: bf16[2,8,2,8,8], index: 3, kind: output, shape index: {}]
  %s4 = sld [smem:[#allocation0]]
  $region45: #{tpu_custom_call.1} parent=0
    _
  %s6 = ssub.s32 1, %s4
  %s7 = scalar_select 0, %s6, %s4
  $region1: #{tpu_custom_call.1} parent=0
    #allocation2 [shape = 'u8[65536]{0}', space=vmem, size = 0x10000, scoped, tag = 'output window, operand 0']
    #allocation3 [shape = 's32[2]{0}', space=sflag, size = 0x8, scoped, tag = 'scoped memory for tpu_custom_call.1']
    %8 = vsyncpa [#allocation3], 0
    %s9 = scalar_lea.sflag [#allocation3], 1
    %10 = vsyncpa %s9, 0
    loop: start=0, step=1, limit=4
    $region2: #{tpu_custom_call.1} parent=1 // loop_pre_header
      _
    $region3: #{tpu_custom_call.1} parent=1 // loop_header
      %s12 = sphi 0, %s16
      %p13 = scmp.ge.s32.totalorder %s12, 4
      %s22 = sphi 0, %s24
      %s25 = sphi 0, %s22
      %s26 = sphi 0, %s25
      %s42 = sphi 0, %s26
      %s46 = sphi 0, %s46
      %s48 = sphi 0, %s46
      %s49 = sphi 0, %s48
      %s63 = sphi 0, %s49
      %s67 = sphi 0, %s67
      %s69 = sphi 0, %s67
      %s70 = sphi 0, %s69
      %s84 = sphi 0, %s70
      %s90 = sphi 0, %s92
      %s93 = sphi 0, %s90
      %s94 = sphi 0, %s93
      %s110 = sphi 0, %s94
    $region4: #{tpu_custom_call.1} parent=1 // loop_header_branch
      %15 = sbr.rel (%p13) target = $region8
    $region5: #{tpu_custom_call.1} parent=1 // loop_body
      %s17 = ssub.s32 %s12, 1
      %s18 = ssub.s32 %s12, 2
      %s19 = sadd.s32 %s12, 1
      %s20 = ssub.s32 %s12, %s19
      %p21 = scmp.eq.s32.totalorder %s20, 0
      %s23 = sadd.s32 %s22, 1
      %s24 = scalar_select %p21, %s22, %s23
      %p27 = pneg %p21
      %p28 = scmp.eq.s32.totalorder %s12, 1
      %p29 = por %p27, %p28
      %p30 = scmp.ne.s32.totalorder %s22, %s25
      %p31 = scmp.eq.s32.totalorder %s12, 0
      %p32 = por %p30, %p31
      %p33 = scmp.ne.s32.totalorder %s22, %s25
      %p34 = scmp.eq.s32.totalorder %s17, 1
      %p35 = por %p33, %p34
      %p36 = scmp.ne.s32.totalorder %s25, %s26
      %p37 = scmp.eq.s32.totalorder %s17, 0
      %p38 = por %p36, %p37
      %p39 = scmp.ne.s32.totalorder %s25, %s26
      %p40 = scmp.eq.s32.totalorder %s18, 1
      %p41 = por %p39, %p40
      %p43 = scmp.ne.s32.totalorder %s26, %s42
      %p44 = scmp.eq.s32.totalorder %s18, 0
      %p45 = por %p43, %p44
      %s47 = sadd.s32 %s46, 1
      %p50 = scmp.eq.s32.totalorder %s12, 1
      %p51 = scmp.ne.s32.totalorder %s46, %s48
      %p52 = scmp.eq.s32.totalorder %s12, 0
      %p53 = por %p51, %p52
      %p54 = scmp.ne.s32.totalorder %s46, %s48
      %p55 = scmp.eq.s32.totalorder %s17, 1
      %p56 = por %p54, %p55
      %p57 = scmp.ne.s32.totalorder %s48, %s49
      %p58 = scmp.eq.s32.totalorder %s17, 0
      %p59 = por %p57, %p58
      %p60 = scmp.ne.s32.totalorder %s48, %s49
      %p61 = scmp.eq.s32.totalorder %s18, 1
      %p62 = por %p60, %p61
      %p64 = scmp.ne.s32.totalorder %s49, %s63
      %p65 = scmp.eq.s32.totalorder %s18, 0
      %p66 = por %p64, %p65
      %s68 = sadd.s32 %s67, 1
      %p71 = scmp.eq.s32.totalorder %s12, 1
      %p72 = scmp.ne.s32.totalorder %s67, %s69
      %p73 = scmp.eq.s32.totalorder %s12, 0
      %p74 = por %p72, %p73
      %p75 = scmp.ne.s32.totalorder %s67, %s69
      %p76 = scmp.eq.s32.totalorder %s17, 1
      %p77 = por %p75, %p76
      %p78 = scmp.ne.s32.totalorder %s69, %s70
      %p79 = scmp.eq.s32.totalorder %s17, 0
      %p80 = por %p78, %p79
      %p81 = scmp.ne.s32.totalorder %s69, %s70
      %p82 = scmp.eq.s32.totalorder %s18, 1
      %p83 = por %p81, %p82
      %p85 = scmp.ne.s32.totalorder %s70, %s84
      %p86 = scmp.eq.s32.totalorder %s18, 0
      %p87 = por %p85, %p86
      %s88 = ssub.s32 %s12, %s19
      %p89 = scmp.eq.s32.totalorder %s88, 0
      %s91 = sadd.s32 %s90, 1
      %s92 = scalar_select %p89, %s90, %s91
      %p95 = pneg %p89
      %p96 = scmp.eq.s32.totalorder %s12, 1
      %p97 = por %p95, %p96
      %p98 = scmp.ne.s32.totalorder %s90, %s93
      %p99 = scmp.eq.s32.totalorder %s12, 0
      %p100 = por %p98, %p99
      %p101 = scmp.ne.s32.totalorder %s90, %s93
      %p102 = scmp.eq.s32.totalorder %s17, 1
      %p103 = por %p101, %p102
      %p104 = scmp.ne.s32.totalorder %s93, %s94
      %p105 = scmp.eq.s32.totalorder %s17, 0
      %p106 = por %p104, %p105
      %p107 = scmp.ne.s32.totalorder %s93, %s94
      %p108 = scmp.eq.s32.totalorder %s18, 1
      %p109 = por %p107, %p108
      %p111 = scmp.ne.s32.totalorder %s94, %s110
      %p112 = scmp.eq.s32.totalorder %s18, 0
      %p113 = por %p111, %p112
      %p114 = scmp.le.s32.totalorder 1, %s12
      %p115 = scmp.lt.s32.totalorder %s12, 3
      %p116 = pnand %p114, %p115
      %p117 = pneg %p116
      // Predicated region
      $region9: #{tpu_custom_call.1} parent=5 // pred_check
        _
      $region10: #{tpu_custom_call.1} parent=5 // pred_check_branch
        %119 = sbr.rel (%p116) target = $region12
      $region11: #{tpu_custom_call.1} parent=5 // pred_region
        %s120 = ssub.s32 %s12, 1
        // Predicated region
        $region13: #{tpu_custom_call.1} parent=11 // pred_check
          %p121 = pneg %p59
        $region14: #{tpu_custom_call.1} parent=11 // pred_check_branch
          %123 = sbr.rel (%p121) target = $region16
        $region15: #{tpu_custom_call.1} parent=11 // pred_region
          _
        $region16: #{tpu_custom_call.1} parent=11 // pred_fallthru
          _
        // Predicated region
        $region17: #{tpu_custom_call.1} parent=11 // pred_check
          %p124 = pneg %p80
        $region18: #{tpu_custom_call.1} parent=11 // pred_check_branch
          %126 = sbr.rel (%p124) target = $region20
        $region19: #{tpu_custom_call.1} parent=11 // pred_region
          _
        $region20: #{tpu_custom_call.1} parent=11 // pred_fallthru
          _
      $region12: #{tpu_custom_call.1} parent=5 // pred_fallthru
        _
      %p127 = scmp.lt.s32.totalorder %s12, 2
      // Predicated region
      $region21: #{tpu_custom_call.1} parent=5 // pred_check
        %p128 = pneg %p127
      $region22: #{tpu_custom_call.1} parent=5 // pred_check_branch
        %130 = sbr.rel (%p128) target = $region24
      $region23: #{tpu_custom_call.1} parent=5 // pred_region
        // Predicated region
        $region25: #{tpu_custom_call.1} parent=23 // pred_check
          %p131 = pneg %p32
        $region26: #{tpu_custom_call.1} parent=23 // pred_check_branch
          %133 = sbr.rel (%p131) target = $region28
        $region27: #{tpu_custom_call.1} parent=23 // pred_region
          %p134 = scmp.lt.s32.totalorder %s12, 1
          %s135 = scalar_select %p134, %s12, 1
          %s136 = smul.addr %s135, 8
          %s137 = smul.addr %s136, 4
          %s138 = scalar_lea.vmem %s0, %s137
        $region28: #{tpu_custom_call.1} parent=23 // pred_fallthru
          _
      $region24: #{tpu_custom_call.1} parent=5 // pred_fallthru
        _
      %p139 = scmp.le.s32.totalorder 1, %s12
      %p140 = scmp.lt.s32.totalorder %s12, 3
      %p141 = pnand %p139, %p140
      %p142 = pneg %p141
      // Predicated region
      $region29: #{tpu_custom_call.1} parent=5 // pred_check
        _
      $region30: #{tpu_custom_call.1} parent=5 // pred_check_branch
        %144 = sbr.rel (%p141) target = $region32
      $region31: #{tpu_custom_call.1} parent=5 // pred_region
        %s145 = ssub.s32 %s12, 1
        %p146 = scmp.lt.s32.totalorder %s17, 1
        %s147 = scalar_select %p146, %s17, 1
        %s148 = smul.addr %s147, 8
        %s149 = smul.addr %s148, 4
        %s150 = scalar_lea.vmem %s0, %s149
        %p151 = pneg %p38
        %p152 = pneg %p35
        %p153 = pneg %p59
        %p154 = pneg %p56
        %p155 = pneg %p80
        %p156 = pneg %p77
        %p157 = pneg %p106
        %p158 = pneg %p103
        %s159 = sand.u32 %s93, 1
        %s160 = scalar_lea.sflag [#allocation3], %s159
        %s161 = sand.u32 %s93, 1
        %s162 = smul.addr %s161, 64
        %s163 = scalar_lea.vmem [#allocation2], %s162
        %p164 = scmp.lt.s32.totalorder %s17, 1
        %s165 = scalar_select %p164, %s17, 1
        %s166 = smul.addr %s165, 8
        %s167 = smul.addr %s166, 4
        %s168 = scalar_lea.vmem %s0, %s167
        %v170 = vld [vmem:[%s168] sm:$0xf]
        %v171 = vld [vmem:[%s168 + $0x4] sm:$0xf]
        %v172 = vld [vmem:[%s168 + $0x8] sm:$0xf]
        %v173 = vld [vmem:[%s168 + $0xc] sm:$0xf]
        %v174 = vld [vmem:[%s168 + $0x10] sm:$0xf]
        %v175 = vld [vmem:[%s168 + $0x14] sm:$0xf]
        %v176 = vld [vmem:[%s168 + $0x18] sm:$0xf]
        %v177 = vld [vmem:[%s168 + $0x1c] sm:$0xf]
        %v178 = vld [vmem:[%s1] sm:$0xf]
        %v179 = vld [vmem:[%s2] sm:$0x1]
        %v181 = vperm.slane %v179, 0
        %v191 = vunpack.c.l.b16 %v170
        %v192 = vunpack.c.l.b16 %v171
        %v193 = vunpack.c.l.b16 %v172
        %v194 = vunpack.c.l.b16 %v173
        %v195 = vunpack.c.l.b16 %v174
        %v196 = vunpack.c.l.b16 %v175
        %v197 = vunpack.c.l.b16 %v176
        %v198 = vunpack.c.l.b16 %v177
        %v199 = vpack.c.b16 %v192, %v191
        %v200 = vpack.c.b16 %v194, %v193
        %v201 = vpack.c.b16 %v196, %v195
        %v202 = vpack.c.b16 %v198, %v197
        %vm203 = vcmask 64512
        %v205 = vsel %vm203, %v199, 0
        %v208 = vsel %vm203, %v200, 0
        %v211 = vsel %vm203, %v201, 0
        %v214 = vsel %vm203, %v202, 0
        %vm216 = vcmask 1043456
        %v218 = vsel %vm216, %v178, 0
        %220 = vmatpush.bf16.msra.mxu0 0
        %221 = vmatpush.bf16.msra.mxu0 0
        %222 = vmatpush.bf16.msra.mxu0 0
        %223 = vmatpush.bf16.msra.mxu0 0
        %224 = vmatpush.bf16.msra.mxu0 0
        %225 = vmatpush.bf16.msra.mxu0 0
        %226 = vmatpush.bf16.msra.mxu0 0
        %227 = vmatpush.bf16.msra.mxu0 %v218
        %228 = vmatmul.bf16.gmra.mxu0 %v205
        %v229 = vpop.f32.mrf.mxu0
        %v230 = vadd.f32 %v181, %v229
        %v231 = vpop.f32.mrf.mxu0
        %v232 = vadd.f32 %v181, %v231
        %233 = vmatmul.bf16.gmra.mxu0 %v208
        %v234 = vpop.f32.mrf.mxu0
        %v235 = vadd.f32 %v181, %v234
        %v236 = vpop.f32.mrf.mxu0
        %v237 = vadd.f32 %v181, %v236
        %238 = vmatmul.bf16.gmra.mxu0 %v211
        %v239 = vpop.f32.mrf.mxu0
        %v240 = vadd.f32 %v181, %v239
        %v241 = vpop.f32.mrf.mxu0
        %v242 = vadd.f32 %v181, %v241
        %243 = vmatmul.bf16.gmra.mxu0 %v214
        %v244 = vpop.f32.mrf.mxu0
        %v245 = vadd.f32 %v181, %v244
        %v246 = vpop.f32.mrf.mxu0
        %v247 = vadd.f32 %v181, %v246
        %248 = vdwg.mxu0
        %v249 = vpack.c.bf16 %v230, %v230
        %v250 = vpack.c.bf16 %v232, %v232
        %v251 = vpack.c.bf16 %v235, %v235
        %v252 = vpack.c.bf16 %v237, %v237
        %v253 = vpack.c.bf16 %v240, %v240
        %v254 = vpack.c.bf16 %v242, %v242
        %v255 = vpack.c.bf16 %v245, %v245
        %v256 = vpack.c.bf16 %v247, %v247
        %vm257 = vcmask 60416
        %258 = vst.msk [vmem:[%s163] sm:$0xf] %vm257, %v249
        %259 = vst.msk [vmem:[%s163 + $0x8] sm:$0xf] %vm257, %v250
        %260 = vst.msk [vmem:[%s163 + $0x10] sm:$0xf] %vm257, %v251
        %261 = vst.msk [vmem:[%s163 + $0x18] sm:$0xf] %vm257, %v252
        %262 = vst.msk [vmem:[%s163 + $0x20] sm:$0xf] %vm257, %v253
        %263 = vst.msk [vmem:[%s163 + $0x28] sm:$0xf] %vm257, %v254
        %264 = vst.msk [vmem:[%s163 + $0x30] sm:$0xf] %vm257, %v255
        %265 = vst.msk [vmem:[%s163 + $0x38] sm:$0xf] %vm257, %v256
        %s266 = scalar_lea.vmem %s1, 4
        %v267 = vld [vmem:[%s266] sm:$0xf]
        %v268 = vld [vmem:[%s2] sm:$0x1]
        %v270 = vperm.slane %v268, 0
        %v273 = vsel %vm216, %v267, 0
        %275 = vmatpush.bf16.msra.mxu0 0
        %276 = vmatpush.bf16.msra.mxu0 0
        %277 = vmatpush.bf16.msra.mxu0 0
        %278 = vmatpush.bf16.msra.mxu0 0
        %279 = vmatpush.bf16.msra.mxu0 0
        %280 = vmatpush.bf16.msra.mxu0 0
        %281 = vmatpush.bf16.msra.mxu0 0
        %282 = vmatpush.bf16.msra.mxu0 %v273
        %283 = vmatmul.bf16.gmra.mxu0 %v205
        %v284 = vpop.f32.mrf.mxu0
        %v285 = vadd.f32 %v270, %v284
        %v286 = vpop.f32.mrf.mxu0
        %v287 = vadd.f32 %v270, %v286
        %288 = vmatmul.bf16.gmra.mxu0 %v208
        %v289 = vpop.f32.mrf.mxu0
        %v290 = vadd.f32 %v270, %v289
        %v291 = vpop.f32.mrf.mxu0
        %v292 = vadd.f32 %v270, %v291
        %293 = vmatmul.bf16.gmra.mxu0 %v211
        %v294 = vpop.f32.mrf.mxu0
        %v295 = vadd.f32 %v270, %v294
        %v296 = vpop.f32.mrf.mxu0
        %v297 = vadd.f32 %v270, %v296
        %298 = vmatmul.bf16.gmra.mxu0 %v214
        %v299 = vpop.f32.mrf.mxu0
        %v300 = vadd.f32 %v270, %v299
        %v301 = vpop.f32.mrf.mxu0
        %v302 = vadd.f32 %v270, %v301
        %303 = vdwg.mxu0
        %v304 = vpack.c.bf16 %v285, %v285
        %v305 = vpack.c.bf16 %v287, %v287
        %v306 = vpack.c.bf16 %v290, %v290
        %v307 = vpack.c.bf16 %v292, %v292
        %v308 = vpack.c.bf16 %v295, %v295
        %v309 = vpack.c.bf16 %v297, %v297
        %v310 = vpack.c.bf16 %v300, %v300
        %v311 = vpack.c.bf16 %v302, %v302
        %s312 = scalar_lea.vmem %s163, 4 [#allocation2]
        %313 = vst.msk [vmem:[%s312] sm:$0xf] %vm257, %v304
        %314 = vst.msk [vmem:[%s312 + $0x8] sm:$0xf] %vm257, %v305
        %315 = vst.msk [vmem:[%s312 + $0x10] sm:$0xf] %vm257, %v306
        %316 = vst.msk [vmem:[%s312 + $0x18] sm:$0xf] %vm257, %v307
        %317 = vst.msk [vmem:[%s312 + $0x20] sm:$0xf] %vm257, %v308
        %318 = vst.msk [vmem:[%s312 + $0x28] sm:$0xf] %vm257, %v309
        %319 = vst.msk [vmem:[%s312 + $0x30] sm:$0xf] %vm257, %v310
        %320 = vst.msk [vmem:[%s312 + $0x38] sm:$0xf] %vm257, %v311
        %s321 = sand.u32 %s93, 1
        %s322 = scalar_lea.sflag [#allocation3], %s321
        %s323 = sand.u32 %s93, 1
        %s324 = smul.addr %s323, 64
        %s325 = scalar_lea.vmem [#allocation2], %s324
        // Predicated region
        $region33: #{tpu_custom_call.1} parent=31 // pred_check
          %p326 = pneg %p103
        $region34: #{tpu_custom_call.1} parent=31 // pred_check_branch
          %328 = sbr.rel (%p326) target = $region36
        $region35: #{tpu_custom_call.1} parent=31 // pred_region
          %330 = vsyncadd %s322, 0
          %s331 = smul.addr %s17, 16
          %s332 = smul.addr %s331, 4
          %s333 = scalar_lea.hbm %s3, %s332
          %s334 = sshll.u32 %s325, 4
          %s335 = int_to_ptr.vmem [resolvable:$true] %s334
          %s336 = sshll.u32 %s333, 4
          %s337 = int_to_ptr.hbm [resolvable:$true] %s336
          %342 = dma.vmem_to_hbm [thread:$0]  %s335, 1024, %s337, %s322, 64, 64, 4
        $region36: #{tpu_custom_call.1} parent=31 // pred_fallthru
          _
      $region32: #{tpu_custom_call.1} parent=5 // pred_fallthru
        _
      %p343 = scmp.le.s32.totalorder 2, %s12
      // Predicated region
      $region37: #{tpu_custom_call.1} parent=5 // pred_check
        %p344 = pneg %p343
      $region38: #{tpu_custom_call.1} parent=5 // pred_check_branch
        %346 = sbr.rel (%p344) target = $region40
      $region39: #{tpu_custom_call.1} parent=5 // pred_region
        %s347 = ssub.s32 %s12, 2
        // Predicated region
        $region41: #{tpu_custom_call.1} parent=39 // pred_check
          %p348 = pneg %p109
        $region42: #{tpu_custom_call.1} parent=39 // pred_check_branch
          %350 = sbr.rel (%p348) target = $region44
        $region43: #{tpu_custom_call.1} parent=39 // pred_region
          %s351 = sand.u32 %s94, 1
          %s352 = scalar_lea.sflag [#allocation3], %s351
          %s353 = sand.u32 %s94, 1
          %s354 = smul.addr %s353, 64
          %s355 = scalar_lea.vmem [#allocation2], %s354
          %357 = dma.done %s352, 1024
        $region44: #{tpu_custom_call.1} parent=39 // pred_fallthru
          _
      $region40: #{tpu_custom_call.1} parent=5 // pred_fallthru
        _
    $region6: #{tpu_custom_call.1} parent=1 // loop_footer
      %s16 = sadd.s32 1, %s12
    $region7: #{tpu_custom_call.1} parent=1 // loop_footer_branch
      %11 = sbr.rel target = $region3
    $region8: #{tpu_custom_call.1} parent=1 // loop_exit
      _
    %358 = vsyncpa [#allocation3], 1
    %s359 = scalar_lea.sflag [#allocation3], 1
    %360 = vsyncpa %s359, 1

</llo_original>
